<compile_context>
chip_gen: v7x
topology: tpu7x:2x2x1
jax: 0.10.0
libtpu: 0.0.40
codegen_flags: <defaults>
</compile_context>

<pallas_src>
import functools

import jax
import jax.numpy as jnp
from jax import lax
from jax.experimental import pallas as pl
from jax.experimental.pallas import tpu as pltpu


def _round_up(x, m):
    return ((x + m - 1) // m) * m


def basic_block_kernel(xf_ref, w1_ref, w2_ref, b1_ref, b2_ref, mask_ref,
                       out_ref, h1_ref, *, shifts, guard):
    # Shapes (whole arrays resident in VMEM, no grid):
    #   xf_ref  : (Cin,  Lbuf) bf16  row-padded x, per-image stride S, zero guard bands
    #   w1_ref  : (Cout, 9*Cin) bf16 conv1 weights, BN1 scale folded, tap-major columns
    #   w2_ref  : (Cout, 9*Cout) bf16 conv2 weights, BN2 scale folded
    #   b1_ref  : (Cout, 1) f32     folded BN1 bias
    #   b2_ref  : (Cout, 1) f32     folded BN2 bias
    #   mask_ref: (1, L)    f32     1.0 on valid lanes (row < H and col < W) else 0.0
    #   out_ref : (Cout, L) f32     L = N*S (lane-dense, multiple of 128)
    #   h1_ref  : (Cout, Lbuf) bf16 scratch: conv1 activation in the same guarded layout
    cout = out_ref.shape[0]
    L = out_ref.shape[1]
    Lbuf = xf_ref.shape[1]

    def tap(ref, s):
        # Value at image-local position (p + s) for every output lane p (static slice).
        return ref[:, guard + s:guard + s + L]

    # ---- conv1 (+ folded BN1 scale): one K = 9*Cin bf16 contraction on the MXU ----
    x_c = tap(xf_ref, 0)                               # centre tap == residual (aligned)
    a1 = jnp.concatenate([x_c if s == 0 else tap(xf_ref, s) for s in shifts], axis=0)
    acc1 = jnp.dot(w1_ref[...], a1, preferred_element_type=jnp.float32)

    # BN1 bias + ReLU; zero pad-columns / tail lanes so they act as conv2's zero halo.
    h1 = jnp.maximum(acc1 + b1_ref[...], 0.0) * mask_ref[...]

    # Re-embed h1 in the guarded layout.  Only the guard bands are zeroed, and all three
    # stores below are 128-lane aligned (no whole-buffer memset, no misaligned store).
    h1_ref[:, :guard] = jnp.zeros((cout, guard), h1_ref.dtype)
    h1_ref[:, guard + L:] = jnp.zeros((cout, Lbuf - guard - L), h1_ref.dtype)
    h1_ref[:, guard:guard + L] = h1.astype(h1_ref.dtype)

    # ---- conv2 (+ folded BN2 scale): one K = 9*Cout bf16 contraction ----
    a2 = jnp.concatenate([tap(h1_ref, s) for s in shifts], axis=0)
    acc2 = jnp.dot(w2_ref[...], a2, preferred_element_type=jnp.float32)

    # BN2 bias + residual (centre-tap slice of x) + ReLU.
    # NOTE: pad columns / tail lanes of out_ref hold garbage; the wrapper crops them.
    out_ref[...] = jnp.maximum(acc2 + b2_ref[...] + x_c.astype(jnp.float32), 0.0)


def basic_block_forward(x_nchw, w1_oihw, w2_oihw, bn1, bn2, eps=1e-5):
    """BasicBlock forward (stride=1, downsample=None).  NCHW in, NCHW out (float32)."""
    g1, be1, m1, v1 = bn1
    g2, be2, m2, v2 = bn2

    x = x_nchw.astype(jnp.float32)
    N, Cin, H, W = x.shape
    Cout = w1_oihw.shape[0]
    assert Cin == Cout, "stride=1 / no-downsample BasicBlock requires inplanes == planes"

    Wp = W + 2                            # row width incl. the 2 zero pad columns
    Lout = H * Wp                         # valid row-padded length per image
    S = _round_up(Lout + Wp + 1, 128)     # per-image lane stride (>= Lout + max |shift|)
    G = 128                               # leading zero guard (covers top-halo shifts)
    L = N * S                             # matmul / output lane extent (multiple of 128)
    Lbuf = G + L + 128                    # guarded buffer width (multiple of 128)

    # Fold eval-mode BN into per-channel scale/bias; fold the scale into the conv weights
    # in f32, THEN cast to bf16 (native single-pass MXU with f32 accumulation).
    s1 = g1.astype(jnp.float32) / jnp.sqrt(v1.astype(jnp.float32) + eps)
    s2 = g2.astype(jnp.float32) / jnp.sqrt(v2.astype(jnp.float32) + eps)
    b1 = (be1.astype(jnp.float32) - m1.astype(jnp.float32) * s1).reshape(Cout, 1)
    b2 = (be2.astype(jnp.float32) - m2.astype(jnp.float32) * s2).reshape(Cout, 1)
    w1f = w1_oihw.astype(jnp.float32) * s1[:, None, None, None]
    w2f = w2_oihw.astype(jnp.float32) * s2[:, None, None, None]
    # Tap-major (Cout, 9*Cin) weight matrices: column index = (ky*3 + kx)*Cin + ci.
    w1t = jnp.transpose(w1f, (0, 2, 3, 1)).reshape(Cout, 9 * Cin).astype(jnp.bfloat16)
    w2t = jnp.transpose(w2f, (0, 2, 3, 1)).reshape(Cout, 9 * Cout).astype(jnp.bfloat16)

    # Row-padded flat input: per image, H rows of width Wp (2 zero pad cols), zero tail to
    # S, images concatenated along lanes, plus 128-lane zero guards at both ends.
    xr = jnp.pad(x, ((0, 0), (0, 0), (0, 0), (0, Wp - W)))        # (N, Cin, H, Wp)
    xr = xr.reshape(N, Cin, Lout)
    xr = jnp.pad(xr, ((0, 0), (0, 0), (0, S - Lout)))             # (N, Cin, S)
    xf = jnp.transpose(xr, (1, 0, 2)).reshape(Cin, L)
    xf = jnp.pad(xf, ((0, 0), (G, Lbuf - G - L))).astype(jnp.bfloat16)   # (Cin, Lbuf)

    # Valid-lane mask (row < H and col < W) over the packed lane axis.
    p = jnp.arange(L, dtype=jnp.int32) % S
    mask = ((p < Lout) & (p % Wp < W)).astype(jnp.float32).reshape(1, L)

    shifts = tuple((dy - 1) * Wp + (dx - 1) for dy in range(3) for dx in range(3))
    kernel = functools.partial(basic_block_kernel, shifts=shifts, guard=G)

    vmem = pl.BlockSpec(memory_space=pltpu.MemorySpace.VMEM)
    out_flat = pl.pallas_call(
        kernel,
        out_shape=jax.ShapeDtypeStruct((Cout, L), jnp.float32),
        in_specs=[vmem] * 6,
        out_specs=vmem,
        scratch_shapes=[pltpu.VMEM((Cout, Lbuf), jnp.bfloat16)],
    )(xf, w1t, w2t, b1, b2, mask)

    # Unpack the lane-dense layout back to NCHW (drops pad columns / tail lanes).
    out = out_flat.reshape(Cout, N, S)[:, :, :Lout]
    out = out.reshape(Cout, N, H, Wp)[:, :, :, :W]
    return jnp.transpose(out, (1, 0, 2, 3))


def basic_block_reference(x, w1, w2, bn1, bn2, eps=1e-5, compute_dtype=jnp.float32):
    """Pure-JAX/XLA reference (NCHW, eval-mode BasicBlock).

    compute_dtype selects the precision of the conv inputs (BN scale folded into the
    weights before casting, matching the kernel's policy); accumulation is float32.
    With compute_dtype=float32 this is the exact PyTorch eval-mode semantics.
    """
    g1, be1, m1, v1 = bn1
    g2, be2, m2, v2 = bn2
    s1 = g1 / jnp.sqrt(v1 + eps)
    s2 = g2 / jnp.sqrt(v2 + eps)
    b1 = be1 - m1 * s1
    b2 = be2 - m2 * s2
    w1f = (w1 * s1[:, None, None, None]).astype(compute_dtype)
    w2f = (w2 * s2[:, None, None, None]).astype(compute_dtype)
    dn = ('NCHW', 'OIHW', 'NCHW')

    xr = x.astype(compute_dtype)
    out = lax.conv_general_dilated(xr, w1f, (1, 1), 'SAME', dimension_numbers=dn,
                                   preferred_element_type=jnp.float32)
    out = jax.nn.relu(out + b1[None, :, None, None])
    out = lax.conv_general_dilated(out.astype(compute_dtype), w2f, (1, 1), 'SAME',
                                   dimension_numbers=dn,
                                   preferred_element_type=jnp.float32)
    out = out + b2[None, :, None, None] + xr.astype(jnp.float32)
    return jax.nn.relu(out)


if __name__ == "__main__":
    key = jax.random.PRNGKey(0)
    ks = jax.random.split(key, 11)

    N, inplanes, planes, H, W = 2, 4, 4, 16, 16   # BasicBlock(inplanes=4, planes=4)

    x = jax.random.normal(ks[0], (N, inplanes, H, W), dtype=jnp.float32)
    w1 = 0.1 * jax.random.normal(ks[1], (planes, inplanes, 3, 3), dtype=jnp.float32)
    w2 = 0.1 * jax.random.normal(ks[2], (planes, planes, 3, 3), dtype=jnp.float32)

    bn1 = (jax.random.uniform(ks[3], (planes,), minval=0.5, maxval=1.5),   # gamma
           0.1 * jax.random.normal(ks[4], (planes,)),                      # beta
           0.1 * jax.random.normal(ks[5], (planes,)),                      # running_mean
           jax.random.uniform(ks[6], (planes,), minval=0.5, maxval=1.5))   # running_var
    bn2 = (jax.random.uniform(ks[7], (planes,), minval=0.5, maxval=1.5),
           0.1 * jax.random.normal(ks[8], (planes,)),
           0.1 * jax.random.normal(ks[9], (planes,)),
           jax.random.uniform(ks[10], (planes,), minval=0.5, maxval=1.5))

    fwd = jax.jit(basic_block_forward)
    out = jax.block_until_ready(fwd(x, w1, w2, bn1, bn2))
    assert out.shape == (N, planes, H, W)

    # Tight check vs a matched-precision reference (bf16 conv inputs, f32 accumulation).
    ref_bf16 = jax.block_until_ready(
        basic_block_reference(x, w1, w2, bn1, bn2, compute_dtype=jnp.bfloat16))
    err_bf16 = jnp.max(jnp.abs(out - ref_bf16))
    assert jnp.allclose(out, ref_bf16, atol=1e-2, rtol=1e-2), \
        f"bf16-ref max abs err = {err_bf16}"

    # Loose sanity check vs the pure-f32 PyTorch-semantics reference (difference is only
    # the bf16 rounding of the MXU inputs, expected ~1e-2).
    ref_f32 = jax.block_until_ready(
        basic_block_reference(x, w1, w2, bn1, bn2, compute_dtype=jnp.float32))
    err_f32 = jnp.max(jnp.abs(out - ref_f32))
    assert jnp.allclose(out, ref_f32, atol=1e-1, rtol=1e-1), \
        f"f32-ref max abs err = {err_f32}"

    print("KERNEL_OK")
</pallas_src>

<mosaic_0001>
module attributes {stable_mosaic.version = 11 : i64} {
  func.func @basic_block_kernel(%arg0: memref<4x1024xbf16, #tpu.memory_space<vmem>>, %arg1: memref<4x36xbf16, #tpu.memory_space<vmem>>, %arg2: memref<4x36xbf16, #tpu.memory_space<vmem>>, %arg3: memref<4x1xf32, #tpu.memory_space<vmem>>, %arg4: memref<4x1xf32, #tpu.memory_space<vmem>>, %arg5: memref<1x768xf32, #tpu.memory_space<vmem>>, %arg6: memref<4x768xf32, #tpu.memory_space<vmem>>, %arg7: memref<4x1024xbf16, #tpu.memory_space<vmem>>) attributes {dimension_semantics = [], scalar_prefetch = 0 : i64, scratch_operands = 1 : i64, tpu.core_type = #tpu.core_type<tc>} {
    %c0 = arith.constant 0 : index
    %c128 = arith.constant 128 : index
    %0 = vector.load %arg0[%c0, %c128] : memref<4x1024xbf16, #tpu.memory_space<vmem>>, vector<4x768xbf16>
    %c0_0 = arith.constant 0 : index
    %c109 = arith.constant 109 : index
    %1 = vector.load %arg0[%c0_0, %c109] : memref<4x1024xbf16, #tpu.memory_space<vmem>>, vector<4x768xbf16>
    %c0_1 = arith.constant 0 : index
    %c110 = arith.constant 110 : index
    %2 = vector.load %arg0[%c0_1, %c110] : memref<4x1024xbf16, #tpu.memory_space<vmem>>, vector<4x768xbf16>
    %c0_2 = arith.constant 0 : index
    %c111 = arith.constant 111 : index
    %3 = vector.load %arg0[%c0_2, %c111] : memref<4x1024xbf16, #tpu.memory_space<vmem>>, vector<4x768xbf16>
    %c0_3 = arith.constant 0 : index
    %c127 = arith.constant 127 : index
    %4 = vector.load %arg0[%c0_3, %c127] : memref<4x1024xbf16, #tpu.memory_space<vmem>>, vector<4x768xbf16>
    %c0_4 = arith.constant 0 : index
    %c129 = arith.constant 129 : index
    %5 = vector.load %arg0[%c0_4, %c129] : memref<4x1024xbf16, #tpu.memory_space<vmem>>, vector<4x768xbf16>
    %c0_5 = arith.constant 0 : index
    %c145 = arith.constant 145 : index
    %6 = vector.load %arg0[%c0_5, %c145] : memref<4x1024xbf16, #tpu.memory_space<vmem>>, vector<4x768xbf16>
    %c0_6 = arith.constant 0 : index
    %c146 = arith.constant 146 : index
    %7 = vector.load %arg0[%c0_6, %c146] : memref<4x1024xbf16, #tpu.memory_space<vmem>>, vector<4x768xbf16>
    %c0_7 = arith.constant 0 : index
    %c147 = arith.constant 147 : index
    %8 = vector.load %arg0[%c0_7, %c147] : memref<4x1024xbf16, #tpu.memory_space<vmem>>, vector<4x768xbf16>
    %9 = tpu.concatenate %1, %2, %3, %4, %0, %5, %6, %7, %8 in 0 : vector<4x768xbf16>, vector<4x768xbf16>, vector<4x768xbf16>, vector<4x768xbf16>, vector<4x768xbf16>, vector<4x768xbf16>, vector<4x768xbf16>, vector<4x768xbf16>, vector<4x768xbf16> -> vector<36x768xbf16>
    %c0_8 = arith.constant 0 : index
    %c0_9 = arith.constant 0 : index
    %10 = vector.load %arg1[%c0_8, %c0_9] : memref<4x36xbf16, #tpu.memory_space<vmem>>, vector<4x36xbf16>
    %cst = arith.constant dense<0.000000e+00> : vector<4x768xf32>
    %11 = tpu.matmul %10, %9, %cst {dimension_numbers = #tpu.dot_dimension_numbers<[1], [0], [0], [1], [0, 0, 1, 1], [], []>} : vector<4x36xbf16>, vector<36x768xbf16>, vector<4x768xf32> -> vector<4x768xf32>
    %c0_10 = arith.constant 0 : index
    %c0_11 = arith.constant 0 : index
    %12 = vector.load %arg3[%c0_10, %c0_11] : memref<4x1xf32, #tpu.memory_space<vmem>>, vector<4x1xf32>
    %13 = vector.broadcast %12 : vector<4x1xf32> to vector<4x768xf32>
    %14 = arith.addf %11, %13 : vector<4x768xf32>
    %cst_12 = arith.constant 0.000000e+00 : f32
    %15 = vector.broadcast %cst_12 : f32 to vector<4x768xf32>
    %16 = arith.maximumf %14, %15 : vector<4x768xf32>
    %c0_13 = arith.constant 0 : index
    %c0_14 = arith.constant 0 : index
    %17 = vector.load %arg5[%c0_13, %c0_14] : memref<1x768xf32, #tpu.memory_space<vmem>>, vector<1x768xf32>
    %18 = vector.broadcast %17 : vector<1x768xf32> to vector<4x768xf32>
    %19 = arith.mulf %16, %18 : vector<4x768xf32>
    %cst_15 = arith.constant 0.000000e+00 : bf16
    %20 = vector.broadcast %cst_15 : bf16 to vector<4x128xbf16>
    %c0_16 = arith.constant 0 : index
    %c0_17 = arith.constant 0 : index
    %21 = vector.load %arg7[%c0_16, %c0_17] : memref<4x1024xbf16, #tpu.memory_space<vmem>>, vector<4x128xbf16>
    tpu.vector_store %arg7[%c0_16, %c0_17], %20 {strides = array<i32>} : memref<4x1024xbf16, #tpu.memory_space<vmem>>, vector<4x128xbf16>,
    %cst_18 = arith.constant 0.000000e+00 : bf16
    %22 = vector.broadcast %cst_18 : bf16 to vector<4x128xbf16>
    %c0_19 = arith.constant 0 : index
    %c896 = arith.constant 896 : index
    %23 = vector.load %arg7[%c0_19, %c896] : memref<4x1024xbf16, #tpu.memory_space<vmem>>, vector<4x128xbf16>
    tpu.vector_store %arg7[%c0_19, %c896], %22 {strides = array<i32>} : memref<4x1024xbf16, #tpu.memory_space<vmem>>, vector<4x128xbf16>,
    %24 = arith.truncf %19 : vector<4x768xf32> to vector<4x768xbf16>
    %c0_20 = arith.constant 0 : index
    %c128_21 = arith.constant 128 : index
    %25 = vector.load %arg7[%c0_20, %c128_21] : memref<4x1024xbf16, #tpu.memory_space<vmem>>, vector<4x768xbf16>
    tpu.vector_store %arg7[%c0_20, %c128_21], %24 {strides = array<i32>} : memref<4x1024xbf16, #tpu.memory_space<vmem>>, vector<4x768xbf16>,
    %c0_22 = arith.constant 0 : index
    %c109_23 = arith.constant 109 : index
    %26 = vector.load %arg7[%c0_22, %c109_23] : memref<4x1024xbf16, #tpu.memory_space<vmem>>, vector<4x768xbf16>
    %c0_24 = arith.constant 0 : index
    %c110_25 = arith.constant 110 : index
    %27 = vector.load %arg7[%c0_24, %c110_25] : memref<4x1024xbf16, #tpu.memory_space<vmem>>, vector<4x768xbf16>
    %c0_26 = arith.constant 0 : index
    %c111_27 = arith.constant 111 : index
    %28 = vector.load %arg7[%c0_26, %c111_27] : memref<4x1024xbf16, #tpu.memory_space<vmem>>, vector<4x768xbf16>
    %c0_28 = arith.constant 0 : index
    %c127_29 = arith.constant 127 : index
    %29 = vector.load %arg7[%c0_28, %c127_29] : memref<4x1024xbf16, #tpu.memory_space<vmem>>, vector<4x768xbf16>
    %c0_30 = arith.constant 0 : index
    %c128_31 = arith.constant 128 : index
    %30 = vector.load %arg7[%c0_30, %c128_31] : memref<4x1024xbf16, #tpu.memory_space<vmem>>, vector<4x768xbf16>
    %c0_32 = arith.constant 0 : index
    %c129_33 = arith.constant 129 : index
    %31 = vector.load %arg7[%c0_32, %c129_33] : memref<4x1024xbf16, #tpu.memory_space<vmem>>, vector<4x768xbf16>
    %c0_34 = arith.constant 0 : index
    %c145_35 = arith.constant 145 : index
    %32 = vector.load %arg7[%c0_34, %c145_35] : memref<4x1024xbf16, #tpu.memory_space<vmem>>, vector<4x768xbf16>
    %c0_36 = arith.constant 0 : index
    %c146_37 = arith.constant 146 : index
    %33 = vector.load %arg7[%c0_36, %c146_37] : memref<4x1024xbf16, #tpu.memory_space<vmem>>, vector<4x768xbf16>
    %c0_38 = arith.constant 0 : index
    %c147_39 = arith.constant 147 : index
    %34 = vector.load %arg7[%c0_38, %c147_39] : memref<4x1024xbf16, #tpu.memory_space<vmem>>, vector<4x768xbf16>
    %35 = tpu.concatenate %26, %27, %28, %29, %30, %31, %32, %33, %34 in 0 : vector<4x768xbf16>, vector<4x768xbf16>, vector<4x768xbf16>, vector<4x768xbf16>, vector<4x768xbf16>, vector<4x768xbf16>, vector<4x768xbf16>, vector<4x768xbf16>, vector<4x768xbf16> -> vector<36x768xbf16>
    %c0_40 = arith.constant 0 : index
    %c0_41 = arith.constant 0 : index
    %36 = vector.load %arg2[%c0_40, %c0_41] : memref<4x36xbf16, #tpu.memory_space<vmem>>, vector<4x36xbf16>
    %cst_42 = arith.constant dense<0.000000e+00> : vector<4x768xf32>
    %37 = tpu.matmul %36, %35, %cst_42 {dimension_numbers = #tpu.dot_dimension_numbers<[1], [0], [0], [1], [0, 0, 1, 1], [], []>} : vector<4x36xbf16>, vector<36x768xbf16>, vector<4x768xf32> -> vector<4x768xf32>
    %c0_43 = arith.constant 0 : index
    %c0_44 = arith.constant 0 : index
    %38 = vector.load %arg4[%c0_43, %c0_44] : memref<4x1xf32, #tpu.memory_space<vmem>>, vector<4x1xf32>
    %39 = vector.broadcast %38 : vector<4x1xf32> to vector<4x768xf32>
    %40 = arith.addf %37, %39 : vector<4x768xf32>
    %41 = arith.extf %0 : vector<4x768xbf16> to vector<4x768xf32>
    %42 = arith.addf %40, %41 : vector<4x768xf32>
    %cst_45 = arith.constant 0.000000e+00 : f32
    %43 = vector.broadcast %cst_45 : f32 to vector<4x768xf32>
    %44 = arith.maximumf %42, %43 : vector<4x768xf32>
    %c0_46 = arith.constant 0 : index
    %c0_47 = arith.constant 0 : index
    %45 = vector.load %arg6[%c0_46, %c0_47] : memref<4x768xf32, #tpu.memory_space<vmem>>, vector<4x768xf32>
    tpu.vector_store %arg6[%c0_46, %c0_47], %44 {strides = array<i32>} : memref<4x768xf32, #tpu.memory_space<vmem>>, vector<4x768xf32>,
    return
  }
}

</mosaic_0001>

<llo_original>
// kernel: basic_block_forward.1
$region0: #{basic_block_forward.1}
  #allocation0 [shape = 'u32[]', space=smem, size = 0x4, offset = 0x4, fixed_abs, tag = 'smem constant byte address 0x4 - core index']
  #allocation1 [shape = 'u32[144,128]{1,0:T(1,128)}', space=vmem, size = 0x12000, scoped, tag = 'internal scratch']
  #allocation2 [shape = 'bf16[4,1024]{1,0:T(4,128)(2,1)}', space=vmem, size = 0x2000, scoped, tag = 'scratch operand']
  %s0 = inlined_call_operand.vmem [shape: bf16[4,1024], index: 0, kind: input, shape index: {}]
  %s1 = inlined_call_operand.vmem [shape: bf16[4,36], index: 1, kind: input, shape index: {}]
  %s2 = inlined_call_operand.vmem [shape: bf16[4,36], index: 2, kind: input, shape index: {}]
  %s3 = inlined_call_operand.vmem [shape: f32[4,1], index: 3, kind: input, shape index: {}]
  %s4 = inlined_call_operand.vmem [shape: f32[4,1], index: 4, kind: input, shape index: {}]
  %s5 = inlined_call_operand.vmem [shape: f32[1,768], index: 5, kind: input, shape index: {}]
  %s6 = inlined_call_operand.vmem [shape: f32[4,768], index: 6, kind: output, shape index: {}]
  %s7 = sld [smem:[#allocation0]]
  $region34: #{basic_block_forward.1} parent=0
    _
  %s9 = ssub.s32 1, %s7
  %s10 = scalar_select 0, %s9, %s7
  // Predicated region
  $region2: #{basic_block_forward.1} parent=0 // pred_check
    _
  $region3: #{basic_block_forward.1} parent=0 // pred_check_branch
    %12 = sbr.rel (0) target = $region5
  $region4: #{basic_block_forward.1} parent=0 // pred_region
    _
  $region5: #{basic_block_forward.1} parent=0 // pred_fallthru
    _
  // Predicated region
  $region6: #{basic_block_forward.1} parent=0 // pred_check
    _
  $region7: #{basic_block_forward.1} parent=0 // pred_check_branch
    %14 = sbr.rel (0) target = $region9
  $region8: #{basic_block_forward.1} parent=0 // pred_region
    _
  $region9: #{basic_block_forward.1} parent=0 // pred_fallthru
    _
  // Predicated region
  $region10: #{basic_block_forward.1} parent=0 // pred_check
    _
  $region11: #{basic_block_forward.1} parent=0 // pred_check_branch
    %16 = sbr.rel (0) target = $region13
  $region12: #{basic_block_forward.1} parent=0 // pred_region
    _
  $region13: #{basic_block_forward.1} parent=0 // pred_fallthru
    _
  // Predicated region
  $region14: #{basic_block_forward.1} parent=0 // pred_check
    _
  $region15: #{basic_block_forward.1} parent=0 // pred_check_branch
    %18 = sbr.rel (0) target = $region17
  $region16: #{basic_block_forward.1} parent=0 // pred_region
    _
  $region17: #{basic_block_forward.1} parent=0 // pred_fallthru
    _
  // Predicated region
  $region18: #{basic_block_forward.1} parent=0 // pred_check
    _
  $region19: #{basic_block_forward.1} parent=0 // pred_check_branch
    %20 = sbr.rel (0) target = $region21
  $region20: #{basic_block_forward.1} parent=0 // pred_region
    _
  $region21: #{basic_block_forward.1} parent=0 // pred_fallthru
    _
  // Predicated region
  $region22: #{basic_block_forward.1} parent=0 // pred_check
    _
  $region23: #{basic_block_forward.1} parent=0 // pred_check_branch
    %22 = sbr.rel (0) target = $region25
  $region24: #{basic_block_forward.1} parent=0 // pred_region
    _
  $region25: #{basic_block_forward.1} parent=0 // pred_fallthru
    _
  %v24 = vld [vmem:[%s0 + $0x2] sm:$0xff]
  %v25 = vld [vmem:[%s0 + $0xa] sm:$0xf]
  %v26 = vld [vmem:[%s0] sm:$0xff]
  %v27 = vld [vmem:[%s0 + $0x8] sm:$0x3f]
  %v28 = vld [vmem:[%s0 + $0x2] sm:$0xff]
  %v29 = vld [vmem:[%s0 + $0xa] sm:$0x3f]
  %v32 = vcombine.high %v26, %v26
  %v34 = vunpack.c.l.s4 1983009808
  %v35 = vunpack.c.0.s8 %v34
  %v36 = vlaneseq
  %v37 = vshrl.u32 %v36, 7
  %v38 = vsub.s32 %v35, %v37
  %v39 = vrot.slane %v26, %v38
  %v41 = vunpack.c.l.s4 1983009808
  %v42 = vunpack.c.0.s8 %v41
  %v43 = vlaneseq
  %v44 = vshrl.u32 %v43, 7
  %v45 = vsub.s32 %v42, %v44
  %v46 = vrot.slane %v32, %v45
  %v47 = vcombine.high %v39, %v39
  %v48 = vcombine.high %v46, %v46
  %v49 = vcombine.high %v27, %v27
  %v51 = vunpack.c.l.s4 1983009808
  %v52 = vunpack.c.0.s8 %v51
  %v53 = vlaneseq
  %v54 = vshrl.u32 %v53, 7
  %v55 = vsub.s32 %v52, %v54
  %v56 = vrot.slane %v27, %v55
  %v58 = vunpack.c.l.s4 1983009808
  %v59 = vunpack.c.0.s8 %v58
  %v60 = vlaneseq
  %v61 = vshrl.u32 %v60, 7
  %v62 = vsub.s32 %v59, %v61
  %v63 = vrot.slane %v49, %v62
  %v64 = vcombine.high %v56, %v56
  %v65 = vcombine.low %v26, %v26
  %v67 = vunpack.c.l.s4 1983009808
  %v68 = vunpack.c.0.s8 %v67
  %v69 = vlaneseq
  %v70 = vshrl.u32 %v69, 7
  %v71 = vsub.s32 %v68, %v70
  %v72 = vrot.slane %v65, %v71
  %v73 = vcombine.high %v72, %v72
  %v74 = vcombine.low %v27, %v27
  %v76 = vunpack.c.l.s4 1983009808
  %v77 = vunpack.c.0.s8 %v76
  %v78 = vlaneseq
  %v79 = vshrl.u32 %v78, 7
  %v80 = vsub.s32 %v77, %v79
  %v81 = vrot.slane %v74, %v80
  %v82 = vcombine.high %v81, %v81
  %83 = vrot.lane.b32.xlu0 %v72, 127
  %v84 = vpop.permute.xlu0 %83
  %85 = vrot.lane.b32.xlu0 %v73, 127
  %v86 = vpop.permute.xlu0 %85
  %87 = vrot.lane.b32.xlu0 %v39, 127
  %v88 = vpop.permute.xlu0 %87
  %89 = vrot.lane.b32.xlu0 %v47, 127
  %v90 = vpop.permute.xlu0 %89
  %91 = vrot.lane.b32.xlu0 %v81, 127
  %v92 = vpop.permute.xlu0 %91
  %93 = vrot.lane.b32.xlu0 %v82, 127
  %v94 = vpop.permute.xlu0 %93
  %95 = vrot.lane.b32.xlu0 %v56, 127
  %v96 = vpop.permute.xlu0 %95
  %vm97 = vcmask 1039360
  %v98 = vsel %vm97, %v84, %v86
  %v99 = vsel %vm97, %v86, %v88
  %v100 = vsel %vm97, %v88, %v90
  %v101 = vsel %vm97, %v90, %v92
  %v102 = vsel %vm97, %v92, %v94
  %v103 = vsel %vm97, %v94, %v96
  %v104 = vcombine.low %v39, %v39
  %v105 = vcombine.low %v46, %v46
  %v106 = vcombine.low %v56, %v56
  %v107 = vcombine.low %v63, %v63
  %108 = vrot.lane.b32.xlu0 %v104, 126
  %v109 = vpop.permute.xlu0 %108
  %110 = vrot.lane.b32.xlu0 %v39, 126
  %v111 = vpop.permute.xlu0 %110
  %112 = vrot.lane.b32.xlu0 %v105, 126
  %v113 = vpop.permute.xlu0 %112
  %114 = vrot.lane.b32.xlu0 %v46, 126
  %v115 = vpop.permute.xlu0 %114
  %116 = vrot.lane.b32.xlu0 %v106, 126
  %v117 = vpop.permute.xlu0 %116
  %118 = vrot.lane.b32.xlu0 %v56, 126
  %v119 = vpop.permute.xlu0 %118
  %120 = vrot.lane.b32.xlu0 %v107, 126
  %v121 = vpop.permute.xlu0 %120
  %vm122 = vcmask 1031168
  %v123 = vsel %vm122, %v109, %v111
  %v124 = vsel %vm122, %v111, %v113
  %v125 = vsel %vm122, %v113, %v115
  %v126 = vsel %vm122, %v115, %v117
  %v127 = vsel %vm122, %v117, %v119
  %v128 = vsel %vm122, %v119, %v121
  %v129 = vcombine.low %v72, %v72
  %v130 = vcombine.low %v81, %v81
  %131 = vrot.lane.b32.xlu0 %v129, 110
  %v132 = vpop.permute.xlu0 %131
  %133 = vrot.lane.b32.xlu0 %v72, 110
  %v134 = vpop.permute.xlu0 %133
  %135 = vrot.lane.b32.xlu0 %v104, 110
  %v136 = vpop.permute.xlu0 %135
  %137 = vrot.lane.b32.xlu0 %v39, 110
  %v138 = vpop.permute.xlu0 %137
  %139 = vrot.lane.b32.xlu0 %v130, 110
  %v140 = vpop.permute.xlu0 %139
  %141 = vrot.lane.b32.xlu0 %v81, 110
  %v142 = vpop.permute.xlu0 %141
  %143 = vrot.lane.b32.xlu0 %v106, 110
  %v144 = vpop.permute.xlu0 %143
  %vm145 = vcmask 900096
  %v146 = vsel %vm145, %v132, %v134
  %v147 = vsel %vm145, %v134, %v136
  %v148 = vsel %vm145, %v136, %v138
  %v149 = vsel %vm145, %v138, %v140
  %v150 = vsel %vm145, %v140, %v142
  %v151 = vsel %vm145, %v142, %v144
  %v154 = vcombine.high %v24, %v24
  %v156 = vunpack.c.l.s4 1983009808
  %v157 = vunpack.c.0.s8 %v156
  %v158 = vlaneseq
  %v159 = vshrl.u32 %v158, 7
  %v160 = vsub.s32 %v157, %v159
  %v161 = vrot.slane %v24, %v160
  %v163 = vunpack.c.l.s4 1983009808
  %v164 = vunpack.c.0.s8 %v163
  %v165 = vlaneseq
  %v166 = vshrl.u32 %v165, 7
  %v167 = vsub.s32 %v164, %v166
  %v168 = vrot.slane %v154, %v167
  %v169 = vcombine.high %v161, %v161
  %v170 = vcombine.high %v168, %v168
  %v172 = vunpack.c.l.s4 1983009808
  %v173 = vunpack.c.0.s8 %v172
  %v174 = vlaneseq
  %v175 = vshrl.u32 %v174, 7
  %v176 = vsub.s32 %v173, %v175
  %v177 = vrot.slane %v25, %v176
  %v178 = vcombine.high %v177, %v177
  %179 = vrot.lane.b32.xlu0 %v161, 109
  %v180 = vpop.permute.xlu0 %179
  %181 = vrot.lane.b32.xlu0 %v169, 109
  %v182 = vpop.permute.xlu0 %181
  %183 = vrot.lane.b32.xlu0 %v168, 109
  %v184 = vpop.permute.xlu0 %183
  %185 = vrot.lane.b32.xlu0 %v170, 109
  %v186 = vpop.permute.xlu0 %185
  %187 = vrot.lane.b32.xlu0 %v177, 109
  %v188 = vpop.permute.xlu0 %187
  %189 = vrot.lane.b32.xlu0 %v178, 109
  %v190 = vpop.permute.xlu0 %189
  %vm191 = vcmask 891904
  %v192 = vsel %vm191, %v180, %v182
  %v193 = vsel %vm191, %v182, %v184
  %v194 = vsel %vm191, %v184, %v186
  %v195 = vsel %vm191, %v186, %v188
  %v196 = vsel %vm191, %v188, %v190
  %v199 = vcombine.low %v28, %v28
  %v201 = vunpack.c.l.s4 1983009808
  %v202 = vunpack.c.0.s8 %v201
  %v203 = vlaneseq
  %v204 = vshrl.u32 %v203, 7
  %v205 = vsub.s32 %v202, %v204
  %v206 = vrot.slane %v199, %v205
  %v208 = vunpack.c.l.s4 1983009808
  %v209 = vunpack.c.0.s8 %v208
  %v210 = vlaneseq
  %v211 = vshrl.u32 %v210, 7
  %v212 = vsub.s32 %v209, %v211
  %v213 = vrot.slane %v28, %v212
  %v214 = vcombine.high %v206, %v206
  %v215 = vcombine.high %v213, %v213
  %v216 = vcombine.low %v29, %v29
  %v218 = vunpack.c.l.s4 1983009808
  %v219 = vunpack.c.0.s8 %v218
  %v220 = vlaneseq
  %v221 = vshrl.u32 %v220, 7
  %v222 = vsub.s32 %v219, %v221
  %v223 = vrot.slane %v216, %v222
  %v225 = vunpack.c.l.s4 1983009808
  %v226 = vunpack.c.0.s8 %v225
  %v227 = vlaneseq
  %v228 = vshrl.u32 %v227, 7
  %v229 = vsub.s32 %v226, %v228
  %v230 = vrot.slane %v29, %v229
  %v231 = vcombine.high %v223, %v223
  %232 = vrot.lane.b32.xlu0 %v206, 108
  %v233 = vpop.permute.xlu0 %232
  %234 = vrot.lane.b32.xlu0 %v214, 108
  %v235 = vpop.permute.xlu0 %234
  %236 = vrot.lane.b32.xlu0 %v213, 108
  %v237 = vpop.permute.xlu0 %236
  %238 = vrot.lane.b32.xlu0 %v215, 108
  %v239 = vpop.permute.xlu0 %238
  %240 = vrot.lane.b32.xlu0 %v223, 108
  %v241 = vpop.permute.xlu0 %240
  %242 = vrot.lane.b32.xlu0 %v231, 108
  %v243 = vpop.permute.xlu0 %242
  %244 = vrot.lane.b32.xlu0 %v230, 108
  %v245 = vpop.permute.xlu0 %244
  %vm246 = vcmask 883712
  %v247 = vsel %vm246, %v233, %v235
  %v248 = vsel %vm246, %v235, %v237
  %v249 = vsel %vm246, %v237, %v239
  %v250 = vsel %vm246, %v239, %v241
  %v251 = vsel %vm246, %v241, %v243
  %v252 = vsel %vm246, %v243, %v245
  %v253 = vcombine.high %v28, %v28
  %v255 = vunpack.c.l.s4 1983009808
  %v256 = vunpack.c.0.s8 %v255
  %v257 = vlaneseq
  %v258 = vshrl.u32 %v257, 7
  %v259 = vsub.s32 %v256, %v258
  %v260 = vrot.slane %v253, %v259
  %v261 = vcombine.low %v213, %v213
  %v262 = vcombine.low %v260, %v260
  %v263 = vcombine.high %v29, %v29
  %v265 = vunpack.c.l.s4 1983009808
  %v266 = vunpack.c.0.s8 %v265
  %v267 = vlaneseq
  %v268 = vshrl.u32 %v267, 7
  %v269 = vsub.s32 %v266, %v268
  %v270 = vrot.slane %v263, %v269
  %v271 = vcombine.low %v230, %v230
  %v272 = vcombine.low %v270, %v270
  %273 = vrot.lane.b32.xlu0 %v261, 92
  %v274 = vpop.permute.xlu0 %273
  %275 = vrot.lane.b32.xlu0 %v213, 92
  %v276 = vpop.permute.xlu0 %275
  %277 = vrot.lane.b32.xlu0 %v262, 92
  %v278 = vpop.permute.xlu0 %277
  %279 = vrot.lane.b32.xlu0 %v260, 92
  %v280 = vpop.permute.xlu0 %279
  %281 = vrot.lane.b32.xlu0 %v271, 92
  %v282 = vpop.permute.xlu0 %281
  %283 = vrot.lane.b32.xlu0 %v230, 92
  %v284 = vpop.permute.xlu0 %283
  %285 = vrot.lane.b32.xlu0 %v272, 92
  %v286 = vpop.permute.xlu0 %285
  %vm287 = vcmask 752640
  %v288 = vsel %vm287, %v274, %v276
  %v289 = vsel %vm287, %v276, %v278
  %v290 = vsel %vm287, %v278, %v280
  %v291 = vsel %vm287, %v280, %v282
  %v292 = vsel %vm287, %v282, %v284
  %v293 = vsel %vm287, %v284, %v286
  %v294 = vcombine.low %v206, %v206
  %v295 = vcombine.low %v223, %v223
  %296 = vrot.lane.b32.xlu0 %v294, 91
  %v297 = vpop.permute.xlu0 %296
  %298 = vrot.lane.b32.xlu0 %v206, 91
  %v299 = vpop.permute.xlu0 %298
  %300 = vrot.lane.b32.xlu0 %v261, 91
  %v301 = vpop.permute.xlu0 %300
  %302 = vrot.lane.b32.xlu0 %v213, 91
  %v303 = vpop.permute.xlu0 %302
  %304 = vrot.lane.b32.xlu0 %v295, 91
  %v305 = vpop.permute.xlu0 %304
  %306 = vrot.lane.b32.xlu0 %v223, 91
  %v307 = vpop.permute.xlu0 %306
  %308 = vrot.lane.b32.xlu0 %v271, 91
  %v309 = vpop.permute.xlu0 %308
  %vm310 = vcmask 744448
  %v311 = vsel %vm310, %v297, %v299
  %v312 = vsel %vm310, %v299, %v301
  %v313 = vsel %vm310, %v301, %v303
  %v314 = vsel %vm310, %v303, %v305
  %v315 = vsel %vm310, %v305, %v307
  %v316 = vsel %vm310, %v307, %v309
  %v317 = vcombine.high %v260, %v260
  %v318 = vcombine.high %v230, %v230
  %319 = vrot.lane.b32.xlu0 %v213, 90
  %v320 = vpop.permute.xlu0 %319
  %321 = vrot.lane.b32.xlu0 %v215, 90
  %v322 = vpop.permute.xlu0 %321
  %323 = vrot.lane.b32.xlu0 %v260, 90
  %v324 = vpop.permute.xlu0 %323
  %325 = vrot.lane.b32.xlu0 %v317, 90
  %v326 = vpop.permute.xlu0 %325
  %327 = vrot.lane.b32.xlu0 %v230, 90
  %v328 = vpop.permute.xlu0 %327
  %329 = vrot.lane.b32.xlu0 %v318, 90
  %v330 = vpop.permute.xlu0 %329
  %331 = vrot.lane.b32.xlu0 %v270, 90
  %v332 = vpop.permute.xlu0 %331
  %vm333 = vcmask 736256
  %v334 = vsel %vm333, %v320, %v322
  %v335 = vsel %vm333, %v322, %v324
  %v336 = vsel %vm333, %v324, %v326
  %v337 = vsel %vm333, %v326, %v328
  %v338 = vsel %vm333, %v328, %v330
  %v339 = vsel %vm333, %v330, %v332
  %vm340 = vcmask 1041408
  %v343 = vsel %vm340, %v39, %v98
  %v346 = vsel %vm340, %v47, %v99
  %v349 = vsel %vm340, %v46, %v100
  %v352 = vsel %vm340, %v48, %v101
  %v355 = vsel %vm340, %v56, %v102
  %v358 = vsel %vm340, %v64, %v103
  %v361 = vsel %vm340, %v63, %v96
  %vm362 = vcmask 1043456
  %v364 = vsel %vm362, %v343, %v123
  %v366 = vsel %vm362, %v346, %v124
  %v368 = vsel %vm362, %v349, %v125
  %v370 = vsel %vm362, %v352, %v126
  %v372 = vsel %vm362, %v355, %v127
  %v374 = vsel %vm362, %v358, %v128
  %v376 = vsel %vm362, %v361, %v121
  %vm377 = vcmask 1045504
  %v379 = vsel %vm377, %v364, %v146
  %v381 = vsel %vm377, %v366, %v147
  %v383 = vsel %vm377, %v368, %v148
  %v385 = vsel %vm377, %v370, %v149
  %v387 = vsel %vm377, %v372, %v150
  %v389 = vsel %vm377, %v374, %v151
  %v391 = vsel %vm377, %v376, %v144
  %v394 = vsel %vm340, %v180, %v233
  %v397 = vsel %vm340, %v192, %v247
  %v400 = vsel %vm340, %v193, %v248
  %v403 = vsel %vm340, %v194, %v249
  %v406 = vsel %vm340, %v195, %v250
  %v409 = vsel %vm340, %v196, %v251
  %v412 = vsel %vm340, %v190, %v252
  %v414 = vsel %vm362, %v394, %v274
  %v416 = vsel %vm362, %v397, %v288
  %v418 = vsel %vm362, %v400, %v289
  %v420 = vsel %vm362, %v403, %v290
  %v422 = vsel %vm362, %v406, %v291
  %v424 = vsel %vm362, %v409, %v292
  %v426 = vsel %vm362, %v412, %v293
  %v428 = vsel %vm377, %v414, %v297
  %v430 = vsel %vm377, %v416, %v311
  %v432 = vsel %vm377, %v418, %v312
  %v434 = vsel %vm377, %v420, %v313
  %v436 = vsel %vm377, %v422, %v314
  %v438 = vsel %vm377, %v424, %v315
  %v440 = vsel %vm377, %v426, %v316
  %v441 = vld [vmem:[%s1] sm:$0x3]
  %v442 = vld [vmem:[%s3] sm:$0xf]
  %444 = vset.pattern.permute.xlu0 0
  %445 = vperm.xlu0 %444, %v442
  %v446 = vpop.permute.xlu0 %445
  %462 = vrot.lane.b32.xlu0 %v379, 19
  %v463 = vpop.permute.xlu0 %462
  %464 = vrot.lane.b32.xlu0 %v381, 19
  %v465 = vpop.permute.xlu0 %464
  %466 = vrot.lane.b32.xlu0 %v383, 19
  %v467 = vpop.permute.xlu0 %466
  %468 = vrot.lane.b32.xlu0 %v385, 19
  %v469 = vpop.permute.xlu0 %468
  %470 = vrot.lane.b32.xlu0 %v387, 19
  %v471 = vpop.permute.xlu0 %470
  %472 = vrot.lane.b32.xlu0 %v389, 19
  %v473 = vpop.permute.xlu0 %472
  %474 = vrot.lane.b32.xlu0 %v391, 19
  %v475 = vpop.permute.xlu0 %474
  %476 = vrot.lane.b32.xlu0 %v428, 19
  %v477 = vpop.permute.xlu0 %476
  %478 = vrot.lane.b32.xlu0 %v430, 19
  %v479 = vpop.permute.xlu0 %478
  %480 = vrot.lane.b32.xlu0 %v432, 19
  %v481 = vpop.permute.xlu0 %480
  %482 = vrot.lane.b32.xlu0 %v434, 19
  %v483 = vpop.permute.xlu0 %482
  %484 = vrot.lane.b32.xlu0 %v436, 19
  %v485 = vpop.permute.xlu0 %484
  %486 = vrot.lane.b32.xlu0 %v438, 19
  %v487 = vpop.permute.xlu0 %486
  %488 = vrot.lane.b32.xlu0 %v440, 19
  %v489 = vpop.permute.xlu0 %488
  %490 = vrot.lane.b32.xlu0 %v320, 19
  %v491 = vpop.permute.xlu0 %490
  %492 = vrot.lane.b32.xlu0 %v334, 19
  %v493 = vpop.permute.xlu0 %492
  %494 = vrot.lane.b32.xlu0 %v335, 19
  %v495 = vpop.permute.xlu0 %494
  %496 = vrot.lane.b32.xlu0 %v336, 19
  %v497 = vpop.permute.xlu0 %496
  %498 = vrot.lane.b32.xlu0 %v337, 19
  %v499 = vpop.permute.xlu0 %498
  %500 = vrot.lane.b32.xlu0 %v338, 19
  %v501 = vpop.permute.xlu0 %500
  %502 = vrot.lane.b32.xlu0 %v339, 19
  %v503 = vpop.permute.xlu0 %502
  %vm504 = vcmask 154624
  %v505 = vsel %vm504, %v463, %v465
  %v506 = vsel %vm504, %v465, %v467
  %v507 = vsel %vm504, %v467, %v469
  %v508 = vsel %vm504, %v469, %v471
  %v509 = vsel %vm504, %v471, %v473
  %v510 = vsel %vm504, %v473, %v475
  %v511 = vsel %vm504, %v477, %v479
  %v512 = vsel %vm504, %v479, %v481
  %v513 = vsel %vm504, %v481, %v483
  %v514 = vsel %vm504, %v483, %v485
  %v515 = vsel %vm504, %v485, %v487
  %v516 = vsel %vm504, %v487, %v489
  %v517 = vsel %vm504, %v491, %v493
  %v518 = vsel %vm504, %v493, %v495
  %v519 = vsel %vm504, %v495, %v497
  %v520 = vsel %vm504, %v497, %v499
  %v521 = vsel %vm504, %v499, %v501
  %v522 = vsel %vm504, %v501, %v503
  %vm535 = vcmask 293888
  %v537 = vsel %vm535, %v441, 0
  %v540 = vsel %vm340, %v517, 0
  %v543 = vsel %vm340, %v518, 0
  %v546 = vsel %vm340, %v519, 0
  %v549 = vsel %vm340, %v520, 0
  %v552 = vsel %vm340, %v521, 0
  %v555 = vsel %vm340, %v522, 0
  %557 = vmatprep.subr.bf16.mxu0 %v506
  %558 = vmatpush1.bf16.msra.mxu0 %v505
  %559 = vmatprep.subr.bf16.mxu0 %v512
  %560 = vmatpush1.bf16.msra.mxu0 %v511
  %561 = vmatprep.subr.bf16.mxu0 %v543
  %562 = vmatpush1.bf16.msra.mxu0 %v540
  %563 = vmatprep.subr.bf16.mxu0 0
  %564 = vmatpush1.bf16.msra.mxu0 0
  %565 = vmatprep.subr.bf16.mxu0 0
  %566 = vmatpush1.bf16.msra.mxu0 0
  %567 = vmatprep.subr.bf16.mxu0 0
  %568 = vmatpush1.bf16.msra.mxu0 0
  %569 = vmatprep.subr.bf16.mxu0 0
  %570 = vmatpush1.bf16.msra.mxu0 0
  %571 = vmatprep.subr.bf16.mxu0 0
  %572 = vmatpush1.bf16.msra.mxu0 0
  %573 = vmatprep.subr.bf16.mxu0 0
  %574 = vmatpush1.bf16.msra.mxu0 0
  %575 = vmatprep.subr.bf16.mxu0 0
  %576 = vmatpush1.bf16.msra.mxu0 0
  %577 = vmatprep.subr.bf16.mxu0 0
  %578 = vmatpush1.bf16.msra.mxu0 0
  %579 = vmatprep.subr.bf16.mxu0 0
  %580 = vmatpush1.bf16.msra.mxu0 0
  %581 = vmatprep.subr.bf16.mxu0 0
  %582 = vmatpush1.bf16.msra.mxu0 0
  %583 = vmatprep.subr.bf16.mxu0 0
  %584 = vmatpush1.bf16.msra.mxu0 0
  %585 = vmatprep.subr.bf16.mxu0 0
  %586 = vmatpush1.bf16.msra.mxu0 0
  %587 = vmatprep.subr.bf16.mxu0 0
  %588 = vmatpush1.bf16.msra.mxu0 0
  %589 = vmatprep.mubr.bf16.mxu0 0
  %590 = vmatmul.mubr.bf16.gmra.mrb[0].mxu0 %v537
  %v591 = vpop.f32.mrb[0].mxu0
  %v592 = vadd.f32 %v446, %v591
  %v593 = vpop.f32.mrb[0].mxu0
  %v594 = vadd.f32 %v446, %v593
  %v595 = vpop.f32.mrb[0].mxu0
  %v596 = vpop.f32.mrb[0].mxu0
  %597 = vdwg.mxu0
  %598 = vmatprep.subr.bf16.mxu0 %v508
  %599 = vmatpush1.bf16.msra.mxu0 %v507
  %600 = vmatprep.subr.bf16.mxu0 %v514
  %601 = vmatpush1.bf16.msra.mxu0 %v513
  %602 = vmatprep.subr.bf16.mxu0 %v549
  %603 = vmatpush1.bf16.msra.mxu0 %v546
  %604 = vmatprep.subr.bf16.mxu0 0
  %605 = vmatpush1.bf16.msra.mxu0 0
  %606 = vmatprep.subr.bf16.mxu0 0
  %607 = vmatpush1.bf16.msra.mxu0 0
  %608 = vmatprep.subr.bf16.mxu0 0
  %609 = vmatpush1.bf16.msra.mxu0 0
  %610 = vmatprep.subr.bf16.mxu0 0
  %611 = vmatpush1.bf16.msra.mxu0 0
  %612 = vmatprep.subr.bf16.mxu0 0
  %613 = vmatpush1.bf16.msra.mxu0 0
  %614 = vmatprep.subr.bf16.mxu0 0
  %615 = vmatpush1.bf16.msra.mxu0 0
  %616 = vmatprep.subr.bf16.mxu0 0
  %617 = vmatpush1.bf16.msra.mxu0 0
  %618 = vmatprep.subr.bf16.mxu0 0
  %619 = vmatpush1.bf16.msra.mxu0 0
  %620 = vmatprep.subr.bf16.mxu0 0
  %621 = vmatpush1.bf16.msra.mxu0 0
  %622 = vmatprep.subr.bf16.mxu0 0
  %623 = vmatpush1.bf16.msra.mxu0 0
  %624 = vmatprep.subr.bf16.mxu0 0
  %625 = vmatpush1.bf16.msra.mxu0 0
  %626 = vmatprep.subr.bf16.mxu0 0
  %627 = vmatpush1.bf16.msra.mxu0 0
  %628 = vmatprep.subr.bf16.mxu0 0
  %629 = vmatpush1.bf16.msra.mxu0 0
  %630 = vmatprep.mubr.bf16.mxu0 0
  %631 = vmatmul.mubr.bf16.gmra.mrb[0].mxu0 %v537
  %v632 = vpop.f32.mrb[0].mxu0
  %v633 = vadd.f32 %v446, %v632
  %v634 = vpop.f32.mrb[0].mxu0
  %v635 = vadd.f32 %v446, %v634
  %v636 = vpop.f32.mrb[0].mxu0
  %v637 = vpop.f32.mrb[0].mxu0
  %638 = vdwg.mxu0
  %639 = vmatprep.subr.bf16.mxu0 %v510
  %640 = vmatpush1.bf16.msra.mxu0 %v509
  %641 = vmatprep.subr.bf16.mxu0 %v516
  %642 = vmatpush1.bf16.msra.mxu0 %v515
  %643 = vmatprep.subr.bf16.mxu0 %v555
  %644 = vmatpush1.bf16.msra.mxu0 %v552
  %645 = vmatprep.subr.bf16.mxu0 0
  %646 = vmatpush1.bf16.msra.mxu0 0
  %647 = vmatprep.subr.bf16.mxu0 0
  %648 = vmatpush1.bf16.msra.mxu0 0
  %649 = vmatprep.subr.bf16.mxu0 0
  %650 = vmatpush1.bf16.msra.mxu0 0
  %651 = vmatprep.subr.bf16.mxu0 0
  %652 = vmatpush1.bf16.msra.mxu0 0
  %653 = vmatprep.subr.bf16.mxu0 0
  %654 = vmatpush1.bf16.msra.mxu0 0
  %655 = vmatprep.subr.bf16.mxu0 0
  %656 = vmatpush1.bf16.msra.mxu0 0
  %657 = vmatprep.subr.bf16.mxu0 0
  %658 = vmatpush1.bf16.msra.mxu0 0
  %659 = vmatprep.subr.bf16.mxu0 0
  %660 = vmatpush1.bf16.msra.mxu0 0
  %661 = vmatprep.subr.bf16.mxu0 0
  %662 = vmatpush1.bf16.msra.mxu0 0
  %663 = vmatprep.subr.bf16.mxu0 0
  %664 = vmatpush1.bf16.msra.mxu0 0
  %665 = vmatprep.subr.bf16.mxu0 0
  %666 = vmatpush1.bf16.msra.mxu0 0
  %667 = vmatprep.subr.bf16.mxu0 0
  %668 = vmatpush1.bf16.msra.mxu0 0
  %669 = vmatprep.subr.bf16.mxu0 0
  %670 = vmatpush1.bf16.msra.mxu0 0
  %671 = vmatprep.mubr.bf16.mxu0 0
  %672 = vmatmul.mubr.bf16.gmra.mrb[0].mxu0 %v537
  %v673 = vpop.f32.mrb[0].mxu0
  %v674 = vadd.f32 %v446, %v673
  %v675 = vpop.f32.mrb[0].mxu0
  %v676 = vadd.f32 %v446, %v675
  %v677 = vpop.f32.mrb[0].mxu0
  %v678 = vpop.f32.mrb[0].mxu0
  %679 = vdwg.mxu0
  %v680 = vmax.f32 %v592, 0.0
  %v681 = vmax.f32 %v594, 0.0
  %v682 = vmax.f32 %v633, 0.0
  %v683 = vmax.f32 %v635, 0.0
  %v684 = vmax.f32 %v674, 0.0
  %v685 = vmax.f32 %v676, 0.0
  %v686 = vld [vmem:[%s5] sm:$0x3f]
  %v688 = vlaneseq
  %v689 = vshrl.u32 %v688, 7
  %v690 = vsub.s32 0, %v689
  %v691 = vrot.slane %v686, %v690
  %v692 = vlaneseq
  %v693 = vshrl.u32 %v692, 7
  %v694 = vsub.s32 1, %v693
  %v695 = vrot.slane %v686, %v694
  %v696 = vlaneseq
  %v697 = vshrl.u32 %v696, 7
  %v698 = vsub.s32 2, %v697
  %v699 = vrot.slane %v686, %v698
  %v700 = vlaneseq
  %v701 = vshrl.u32 %v700, 7
  %v702 = vsub.s32 3, %v701
  %v703 = vrot.slane %v686, %v702
  %v704 = vlaneseq
  %v705 = vshrl.u32 %v704, 7
  %v706 = vsub.s32 4, %v705
  %v707 = vrot.slane %v686, %v706
  %v708 = vlaneseq
  %v709 = vshrl.u32 %v708, 7
  %v710 = vsub.s32 5, %v709
  %v711 = vrot.slane %v686, %v710
  %v718 = vmul.f32 %v680, %v691
  %v719 = vmul.f32 %v681, %v695
  %v720 = vmul.f32 %v682, %v699
  %v721 = vmul.f32 %v683, %v703
  %v722 = vmul.f32 %v684, %v707
  %v723 = vmul.f32 %v685, %v711
  %724 = vst [vmem:[#allocation2] sm:$0x3] 0
  %725 = vst [vmem:[#allocation2 + $0xe] sm:$0x3] 0
  %v726 = vpack.c.bf16 %v718, %v718
  %v727 = vpack.c.bf16 %v719, %v719
  %v728 = vpack.c.bf16 %v720, %v720
  %v729 = vpack.c.bf16 %v721, %v721
  %v730 = vpack.c.bf16 %v722, %v722
  %v731 = vpack.c.bf16 %v723, %v723
  %v738 = vcombine.low %v726, %v727
  %v739 = vcombine.low %v728, %v729
  %v741 = vunpack.c.l.s4 1983009808
  %v742 = vunpack.c.0.s8 %v741
  %v743 = vlaneseq
  %v744 = vshrl.u32 %v743, 7
  %v745 = vsub.s32 %v742, %v744
  %v746 = vrot.slane %v738, %v745
  %v748 = vunpack.c.l.s4 1983009808
  %v749 = vunpack.c.0.s8 %v748
  %v750 = vlaneseq
  %v751 = vshrl.u32 %v750, 7
  %v752 = vsub.s32 %v749, %v751
  %v753 = vrot.slane %v739, %v752
  %v754 = vcombine.low %v746, %v753
  %v755 = vcombine.low %v730, %v731
  %v757 = vunpack.c.l.s4 1983009808
  %v758 = vunpack.c.0.s8 %v757
  %v759 = vlaneseq
  %v760 = vshrl.u32 %v759, 7
  %v761 = vsub.s32 %v758, %v760
  %v762 = vrot.slane %v755, %v761
  %765 = vst [vmem:[#allocation2 + $0x2] sm:$0xff] %v754
  %766 = vst [vmem:[#allocation2 + $0xa] sm:$0xf] %v762
  %v767 = vld [vmem:[#allocation2] sm:$0xff]
  %v768 = vld [vmem:[#allocation2 + $0x8] sm:$0x3f]
  %v769 = vld [vmem:[#allocation2 + $0x2] sm:$0xff]
  %v770 = vld [vmem:[#allocation2 + $0xa] sm:$0xf]
  %v771 = vld [vmem:[#allocation2 + $0x2] sm:$0xff]
  %v772 = vld [vmem:[#allocation2 + $0xa] sm:$0x3f]
  %v775 = vcombine.high %v767, %v767
  %v777 = vunpack.c.l.s4 1983009808
  %v778 = vunpack.c.0.s8 %v777
  %v779 = vlaneseq
  %v780 = vshrl.u32 %v779, 7
  %v781 = vsub.s32 %v778, %v780
  %v782 = vrot.slane %v767, %v781
  %v784 = vunpack.c.l.s4 1983009808
  %v785 = vunpack.c.0.s8 %v784
  %v786 = vlaneseq
  %v787 = vshrl.u32 %v786, 7
  %v788 = vsub.s32 %v785, %v787
  %v789 = vrot.slane %v775, %v788
  %v790 = vcombine.high %v782, %v782
  %v791 = vcombine.high %v789, %v789
  %v792 = vcombine.high %v768, %v768
  %v794 = vunpack.c.l.s4 1983009808
  %v795 = vunpack.c.0.s8 %v794
  %v796 = vlaneseq
  %v797 = vshrl.u32 %v796, 7
  %v798 = vsub.s32 %v795, %v797
  %v799 = vrot.slane %v768, %v798
  %v801 = vunpack.c.l.s4 1983009808
  %v802 = vunpack.c.0.s8 %v801
  %v803 = vlaneseq
  %v804 = vshrl.u32 %v803, 7
  %v805 = vsub.s32 %v802, %v804
  %v806 = vrot.slane %v792, %v805
  %v807 = vcombine.high %v799, %v799
  %v808 = vcombine.low %v767, %v767
  %v810 = vunpack.c.l.s4 1983009808
  %v811 = vunpack.c.0.s8 %v810
  %v812 = vlaneseq
  %v813 = vshrl.u32 %v812, 7
  %v814 = vsub.s32 %v811, %v813
  %v815 = vrot.slane %v808, %v814
  %v816 = vcombine.high %v815, %v815
  %v817 = vcombine.low %v768, %v768
  %v819 = vunpack.c.l.s4 1983009808
  %v820 = vunpack.c.0.s8 %v819
  %v821 = vlaneseq
  %v822 = vshrl.u32 %v821, 7
  %v823 = vsub.s32 %v820, %v822
  %v824 = vrot.slane %v817, %v823
  %v825 = vcombine.high %v824, %v824
  %826 = vrot.lane.b32.xlu0 %v815, 127
  %v827 = vpop.permute.xlu0 %826
  %828 = vrot.lane.b32.xlu0 %v816, 127
  %v829 = vpop.permute.xlu0 %828
  %830 = vrot.lane.b32.xlu0 %v782, 127
  %v831 = vpop.permute.xlu0 %830
  %832 = vrot.lane.b32.xlu0 %v790, 127
  %v833 = vpop.permute.xlu0 %832
  %834 = vrot.lane.b32.xlu0 %v824, 127
  %v835 = vpop.permute.xlu0 %834
  %836 = vrot.lane.b32.xlu0 %v825, 127
  %v837 = vpop.permute.xlu0 %836
  %838 = vrot.lane.b32.xlu0 %v799, 127
  %v839 = vpop.permute.xlu0 %838
  %v840 = vsel %vm97, %v827, %v829
  %v841 = vsel %vm97, %v829, %v831
  %v842 = vsel %vm97, %v831, %v833
  %v843 = vsel %vm97, %v833, %v835
  %v844 = vsel %vm97, %v835, %v837
  %v845 = vsel %vm97, %v837, %v839
  %v846 = vcombine.low %v782, %v782
  %v847 = vcombine.low %v789, %v789
  %v848 = vcombine.low %v799, %v799
  %v849 = vcombine.low %v806, %v806
  %850 = vrot.lane.b32.xlu0 %v846, 126
  %v851 = vpop.permute.xlu0 %850
  %852 = vrot.lane.b32.xlu0 %v782, 126
  %v853 = vpop.permute.xlu0 %852
  %854 = vrot.lane.b32.xlu0 %v847, 126
  %v855 = vpop.permute.xlu0 %854
  %856 = vrot.lane.b32.xlu0 %v789, 126
  %v857 = vpop.permute.xlu0 %856
  %858 = vrot.lane.b32.xlu0 %v848, 126
  %v859 = vpop.permute.xlu0 %858
  %860 = vrot.lane.b32.xlu0 %v799, 126
  %v861 = vpop.permute.xlu0 %860
  %862 = vrot.lane.b32.xlu0 %v849, 126
  %v863 = vpop.permute.xlu0 %862
  %v864 = vsel %vm122, %v851, %v853
  %v865 = vsel %vm122, %v853, %v855
  %v866 = vsel %vm122, %v855, %v857
  %v867 = vsel %vm122, %v857, %v859
  %v868 = vsel %vm122, %v859, %v861
  %v869 = vsel %vm122, %v861, %v863
  %v870 = vcombine.low %v815, %v815
  %v871 = vcombine.low %v824, %v824
  %872 = vrot.lane.b32.xlu0 %v870, 110
  %v873 = vpop.permute.xlu0 %872
  %874 = vrot.lane.b32.xlu0 %v815, 110
  %v875 = vpop.permute.xlu0 %874
  %876 = vrot.lane.b32.xlu0 %v846, 110
  %v877 = vpop.permute.xlu0 %876
  %878 = vrot.lane.b32.xlu0 %v782, 110
  %v879 = vpop.permute.xlu0 %878
  %880 = vrot.lane.b32.xlu0 %v871, 110
  %v881 = vpop.permute.xlu0 %880
  %882 = vrot.lane.b32.xlu0 %v824, 110
  %v883 = vpop.permute.xlu0 %882
  %884 = vrot.lane.b32.xlu0 %v848, 110
  %v885 = vpop.permute.xlu0 %884
  %v886 = vsel %vm145, %v873, %v875
  %v887 = vsel %vm145, %v875, %v877
  %v888 = vsel %vm145, %v877, %v879
  %v889 = vsel %vm145, %v879, %v881
  %v890 = vsel %vm145, %v881, %v883
  %v891 = vsel %vm145, %v883, %v885
  %v894 = vcombine.high %v769, %v769
  %v896 = vunpack.c.l.s4 1983009808
  %v897 = vunpack.c.0.s8 %v896
  %v898 = vlaneseq
  %v899 = vshrl.u32 %v898, 7
  %v900 = vsub.s32 %v897, %v899
  %v901 = vrot.slane %v769, %v900
  %v903 = vunpack.c.l.s4 1983009808
  %v904 = vunpack.c.0.s8 %v903
  %v905 = vlaneseq
  %v906 = vshrl.u32 %v905, 7
  %v907 = vsub.s32 %v904, %v906
  %v908 = vrot.slane %v894, %v907
  %v909 = vcombine.high %v901, %v901
  %v910 = vcombine.high %v908, %v908
  %v912 = vunpack.c.l.s4 1983009808
  %v913 = vunpack.c.0.s8 %v912
  %v914 = vlaneseq
  %v915 = vshrl.u32 %v914, 7
  %v916 = vsub.s32 %v913, %v915
  %v917 = vrot.slane %v770, %v916
  %v918 = vcombine.high %v917, %v917
  %919 = vrot.lane.b32.xlu0 %v901, 109
  %v920 = vpop.permute.xlu0 %919
  %921 = vrot.lane.b32.xlu0 %v909, 109
  %v922 = vpop.permute.xlu0 %921
  %923 = vrot.lane.b32.xlu0 %v908, 109
  %v924 = vpop.permute.xlu0 %923
  %925 = vrot.lane.b32.xlu0 %v910, 109
  %v926 = vpop.permute.xlu0 %925
  %927 = vrot.lane.b32.xlu0 %v917, 109
  %v928 = vpop.permute.xlu0 %927
  %929 = vrot.lane.b32.xlu0 %v918, 109
  %v930 = vpop.permute.xlu0 %929
  %v931 = vsel %vm191, %v920, %v922
  %v932 = vsel %vm191, %v922, %v924
  %v933 = vsel %vm191, %v924, %v926
  %v934 = vsel %vm191, %v926, %v928
  %v935 = vsel %vm191, %v928, %v930
  %v938 = vcombine.low %v771, %v771
  %v940 = vunpack.c.l.s4 1983009808
  %v941 = vunpack.c.0.s8 %v940
  %v942 = vlaneseq
  %v943 = vshrl.u32 %v942, 7
  %v944 = vsub.s32 %v941, %v943
  %v945 = vrot.slane %v938, %v944
  %v947 = vunpack.c.l.s4 1983009808
  %v948 = vunpack.c.0.s8 %v947
  %v949 = vlaneseq
  %v950 = vshrl.u32 %v949, 7
  %v951 = vsub.s32 %v948, %v950
  %v952 = vrot.slane %v771, %v951
  %v953 = vcombine.high %v945, %v945
  %v954 = vcombine.high %v952, %v952
  %v955 = vcombine.low %v772, %v772
  %v957 = vunpack.c.l.s4 1983009808
  %v958 = vunpack.c.0.s8 %v957
  %v959 = vlaneseq
  %v960 = vshrl.u32 %v959, 7
  %v961 = vsub.s32 %v958, %v960
  %v962 = vrot.slane %v955, %v961
  %v964 = vunpack.c.l.s4 1983009808
  %v965 = vunpack.c.0.s8 %v964
  %v966 = vlaneseq
  %v967 = vshrl.u32 %v966, 7
  %v968 = vsub.s32 %v965, %v967
  %v969 = vrot.slane %v772, %v968
  %v970 = vcombine.high %v962, %v962
  %971 = vrot.lane.b32.xlu0 %v945, 108
  %v972 = vpop.permute.xlu0 %971
  %973 = vrot.lane.b32.xlu0 %v953, 108
  %v974 = vpop.permute.xlu0 %973
  %975 = vrot.lane.b32.xlu0 %v952, 108
  %v976 = vpop.permute.xlu0 %975
  %977 = vrot.lane.b32.xlu0 %v954, 108
  %v978 = vpop.permute.xlu0 %977
  %979 = vrot.lane.b32.xlu0 %v962, 108
  %v980 = vpop.permute.xlu0 %979
  %981 = vrot.lane.b32.xlu0 %v970, 108
  %v982 = vpop.permute.xlu0 %981
  %983 = vrot.lane.b32.xlu0 %v969, 108
  %v984 = vpop.permute.xlu0 %983
  %v985 = vsel %vm246, %v972, %v974
  %v986 = vsel %vm246, %v974, %v976
  %v987 = vsel %vm246, %v976, %v978
  %v988 = vsel %vm246, %v978, %v980
  %v989 = vsel %vm246, %v980, %v982
  %v990 = vsel %vm246, %v982, %v984
  %v991 = vcombine.high %v771, %v771
  %v993 = vunpack.c.l.s4 1983009808
  %v994 = vunpack.c.0.s8 %v993
  %v995 = vlaneseq
  %v996 = vshrl.u32 %v995, 7
  %v997 = vsub.s32 %v994, %v996
  %v998 = vrot.slane %v991, %v997
  %v999 = vcombine.low %v952, %v952
  %v1000 = vcombine.low %v998, %v998
  %v1001 = vcombine.high %v772, %v772
  %v1003 = vunpack.c.l.s4 1983009808
  %v1004 = vunpack.c.0.s8 %v1003
  %v1005 = vlaneseq
  %v1006 = vshrl.u32 %v1005, 7
  %v1007 = vsub.s32 %v1004, %v1006
  %v1008 = vrot.slane %v1001, %v1007
  %v1009 = vcombine.low %v969, %v969
  %v1010 = vcombine.low %v1008, %v1008
  %1011 = vrot.lane.b32.xlu0 %v999, 92
  %v1012 = vpop.permute.xlu0 %1011
  %1013 = vrot.lane.b32.xlu0 %v952, 92
  %v1014 = vpop.permute.xlu0 %1013
  %1015 = vrot.lane.b32.xlu0 %v1000, 92
  %v1016 = vpop.permute.xlu0 %1015
  %1017 = vrot.lane.b32.xlu0 %v998, 92
  %v1018 = vpop.permute.xlu0 %1017
  %1019 = vrot.lane.b32.xlu0 %v1009, 92
  %v1020 = vpop.permute.xlu0 %1019
  %1021 = vrot.lane.b32.xlu0 %v969, 92
  %v1022 = vpop.permute.xlu0 %1021
  %1023 = vrot.lane.b32.xlu0 %v1010, 92
  %v1024 = vpop.permute.xlu0 %1023
  %v1025 = vsel %vm287, %v1012, %v1014
  %v1026 = vsel %vm287, %v1014, %v1016
  %v1027 = vsel %vm287, %v1016, %v1018
  %v1028 = vsel %vm287, %v1018, %v1020
  %v1029 = vsel %vm287, %v1020, %v1022
  %v1030 = vsel %vm287, %v1022, %v1024
  %v1031 = vcombine.low %v945, %v945
  %v1032 = vcombine.low %v962, %v962
  %1033 = vrot.lane.b32.xlu0 %v1031, 91
  %v1034 = vpop.permute.xlu0 %1033
  %1035 = vrot.lane.b32.xlu0 %v945, 91
  %v1036 = vpop.permute.xlu0 %1035
  %1037 = vrot.lane.b32.xlu0 %v999, 91
  %v1038 = vpop.permute.xlu0 %1037
  %1039 = vrot.lane.b32.xlu0 %v952, 91
  %v1040 = vpop.permute.xlu0 %1039
  %1041 = vrot.lane.b32.xlu0 %v1032, 91
  %v1042 = vpop.permute.xlu0 %1041
  %1043 = vrot.lane.b32.xlu0 %v962, 91
  %v1044 = vpop.permute.xlu0 %1043
  %1045 = vrot.lane.b32.xlu0 %v1009, 91
  %v1046 = vpop.permute.xlu0 %1045
  %v1047 = vsel %vm310, %v1034, %v1036
  %v1048 = vsel %vm310, %v1036, %v1038
  %v1049 = vsel %vm310, %v1038, %v1040
  %v1050 = vsel %vm310, %v1040, %v1042
  %v1051 = vsel %vm310, %v1042, %v1044
  %v1052 = vsel %vm310, %v1044, %v1046
  %v1053 = vcombine.high %v998, %v998
  %v1054 = vcombine.high %v969, %v969
  %1055 = vrot.lane.b32.xlu0 %v952, 90
  %v1056 = vpop.permute.xlu0 %1055
  %1057 = vrot.lane.b32.xlu0 %v954, 90
  %v1058 = vpop.permute.xlu0 %1057
  %1059 = vrot.lane.b32.xlu0 %v998, 90
  %v1060 = vpop.permute.xlu0 %1059
  %1061 = vrot.lane.b32.xlu0 %v1053, 90
  %v1062 = vpop.permute.xlu0 %1061
  %1063 = vrot.lane.b32.xlu0 %v969, 90
  %v1064 = vpop.permute.xlu0 %1063
  %1065 = vrot.lane.b32.xlu0 %v1054, 90
  %v1066 = vpop.permute.xlu0 %1065
  %1067 = vrot.lane.b32.xlu0 %v1008, 90
  %v1068 = vpop.permute.xlu0 %1067
  %v1069 = vsel %vm333, %v1056, %v1058
  %v1070 = vsel %vm333, %v1058, %v1060
  %v1071 = vsel %vm333, %v1060, %v1062
  %v1072 = vsel %vm333, %v1062, %v1064
  %v1073 = vsel %vm333, %v1064, %v1066
  %v1074 = vsel %vm333, %v1066, %v1068
  %v1077 = vsel %vm340, %v782, %v840
  %v1080 = vsel %vm340, %v790, %v841
  %v1083 = vsel %vm340, %v789, %v842
  %v1086 = vsel %vm340, %v791, %v843
  %v1089 = vsel %vm340, %v799, %v844
  %v1092 = vsel %vm340, %v807, %v845
  %v1095 = vsel %vm340, %v806, %v839
  %v1097 = vsel %vm362, %v1077, %v864
  %v1099 = vsel %vm362, %v1080, %v865
  %v1101 = vsel %vm362, %v1083, %v866
  %v1103 = vsel %vm362, %v1086, %v867
  %v1105 = vsel %vm362, %v1089, %v868
  %v1107 = vsel %vm362, %v1092, %v869
  %v1109 = vsel %vm362, %v1095, %v863
  %v1111 = vsel %vm377, %v1097, %v886
  %v1113 = vsel %vm377, %v1099, %v887
  %v1115 = vsel %vm377, %v1101, %v888
  %v1117 = vsel %vm377, %v1103, %v889
  %v1119 = vsel %vm377, %v1105, %v890
  %v1121 = vsel %vm377, %v1107, %v891
  %v1123 = vsel %vm377, %v1109, %v885
  %v1126 = vsel %vm340, %v920, %v972
  %v1129 = vsel %vm340, %v931, %v985
  %v1132 = vsel %vm340, %v932, %v986
  %v1135 = vsel %vm340, %v933, %v987
  %v1138 = vsel %vm340, %v934, %v988
  %v1141 = vsel %vm340, %v935, %v989
  %v1144 = vsel %vm340, %v930, %v990
  %v1146 = vsel %vm362, %v1126, %v1012
  %v1148 = vsel %vm362, %v1129, %v1025
  %v1150 = vsel %vm362, %v1132, %v1026
  %v1152 = vsel %vm362, %v1135, %v1027
  %v1154 = vsel %vm362, %v1138, %v1028
  %v1156 = vsel %vm362, %v1141, %v1029
  %v1158 = vsel %vm362, %v1144, %v1030
  %v1160 = vsel %vm377, %v1146, %v1034
  %v1162 = vsel %vm377, %v1148, %v1047
  %v1164 = vsel %vm377, %v1150, %v1048
  %v1166 = vsel %vm377, %v1152, %v1049
  %v1168 = vsel %vm377, %v1154, %v1050
  %v1170 = vsel %vm377, %v1156, %v1051
  %v1172 = vsel %vm377, %v1158, %v1052
  %v1173 = vld [vmem:[%s2] sm:$0x3]
  %v1174 = vld [vmem:[%s4] sm:$0xf]
  %1176 = vset.pattern.permute.xlu0 0
  %1177 = vperm.xlu0 %1176, %v1174
  %v1178 = vpop.permute.xlu0 %1177
  %1194 = vrot.lane.b32.xlu0 %v1111, 19
  %v1195 = vpop.permute.xlu0 %1194
  %1196 = vrot.lane.b32.xlu0 %v1113, 19
  %v1197 = vpop.permute.xlu0 %1196
  %1198 = vrot.lane.b32.xlu0 %v1115, 19
  %v1199 = vpop.permute.xlu0 %1198
  %1200 = vrot.lane.b32.xlu0 %v1117, 19
  %v1201 = vpop.permute.xlu0 %1200
  %1202 = vrot.lane.b32.xlu0 %v1119, 19
  %v1203 = vpop.permute.xlu0 %1202
  %1204 = vrot.lane.b32.xlu0 %v1121, 19
  %v1205 = vpop.permute.xlu0 %1204
  %1206 = vrot.lane.b32.xlu0 %v1123, 19
  %v1207 = vpop.permute.xlu0 %1206
  %1208 = vrot.lane.b32.xlu0 %v1160, 19
  %v1209 = vpop.permute.xlu0 %1208
  %1210 = vrot.lane.b32.xlu0 %v1162, 19
  %v1211 = vpop.permute.xlu0 %1210
  %1212 = vrot.lane.b32.xlu0 %v1164, 19
  %v1213 = vpop.permute.xlu0 %1212
  %1214 = vrot.lane.b32.xlu0 %v1166, 19
  %v1215 = vpop.permute.xlu0 %1214
  %1216 = vrot.lane.b32.xlu0 %v1168, 19
  %v1217 = vpop.permute.xlu0 %1216
  %1218 = vrot.lane.b32.xlu0 %v1170, 19
  %v1219 = vpop.permute.xlu0 %1218
  %1220 = vrot.lane.b32.xlu0 %v1172, 19
  %v1221 = vpop.permute.xlu0 %1220
  %1222 = vrot.lane.b32.xlu0 %v1056, 19
  %v1223 = vpop.permute.xlu0 %1222
  %1224 = vrot.lane.b32.xlu0 %v1069, 19
  %v1225 = vpop.permute.xlu0 %1224
  %1226 = vrot.lane.b32.xlu0 %v1070, 19
  %v1227 = vpop.permute.xlu0 %1226
  %1228 = vrot.lane.b32.xlu0 %v1071, 19
  %v1229 = vpop.permute.xlu0 %1228
  %1230 = vrot.lane.b32.xlu0 %v1072, 19
  %v1231 = vpop.permute.xlu0 %1230
  %1232 = vrot.lane.b32.xlu0 %v1073, 19
  %v1233 = vpop.permute.xlu0 %1232
  %1234 = vrot.lane.b32.xlu0 %v1074, 19
  %v1235 = vpop.permute.xlu0 %1234
  %v1236 = vsel %vm504, %v1195, %v1197
  %v1237 = vsel %vm504, %v1197, %v1199
  %v1238 = vsel %vm504, %v1199, %v1201
  %v1239 = vsel %vm504, %v1201, %v1203
  %v1240 = vsel %vm504, %v1203, %v1205
  %v1241 = vsel %vm504, %v1205, %v1207
  %v1242 = vsel %vm504, %v1209, %v1211
  %v1243 = vsel %vm504, %v1211, %v1213
  %v1244 = vsel %vm504, %v1213, %v1215
  %v1245 = vsel %vm504, %v1215, %v1217
  %v1246 = vsel %vm504, %v1217, %v1219
  %v1247 = vsel %vm504, %v1219, %v1221
  %v1248 = vsel %vm504, %v1223, %v1225
  %v1249 = vsel %vm504, %v1225, %v1227
  %v1250 = vsel %vm504, %v1227, %v1229
  %v1251 = vsel %vm504, %v1229, %v1231
  %v1252 = vsel %vm504, %v1231, %v1233
  %v1253 = vsel %vm504, %v1233, %v1235
  %v1267 = vsel %vm535, %v1173, 0
  %v1270 = vsel %vm340, %v1248, 0
  %v1273 = vsel %vm340, %v1249, 0
  %v1276 = vsel %vm340, %v1250, 0
  %v1279 = vsel %vm340, %v1251, 0
  %v1282 = vsel %vm340, %v1252, 0
  %v1285 = vsel %vm340, %v1253, 0
  %1287 = vmatprep.subr.bf16.mxu0 %v1237
  %1288 = vmatpush1.bf16.msra.mxu0 %v1236
  %1289 = vmatprep.subr.bf16.mxu0 %v1243
  %1290 = vmatpush1.bf16.msra.mxu0 %v1242
  %1291 = vmatprep.subr.bf16.mxu0 %v1273
  %1292 = vmatpush1.bf16.msra.mxu0 %v1270
  %1293 = vmatprep.subr.bf16.mxu0 0
  %1294 = vmatpush1.bf16.msra.mxu0 0
  %1295 = vmatprep.subr.bf16.mxu0 0
  %1296 = vmatpush1.bf16.msra.mxu0 0
  %1297 = vmatprep.subr.bf16.mxu0 0
  %1298 = vmatpush1.bf16.msra.mxu0 0
  %1299 = vmatprep.subr.bf16.mxu0 0
  %1300 = vmatpush1.bf16.msra.mxu0 0
  %1301 = vmatprep.subr.bf16.mxu0 0
  %1302 = vmatpush1.bf16.msra.mxu0 0
  %1303 = vmatprep.subr.bf16.mxu0 0
  %1304 = vmatpush1.bf16.msra.mxu0 0
  %1305 = vmatprep.subr.bf16.mxu0 0
  %1306 = vmatpush1.bf16.msra.mxu0 0
  %1307 = vmatprep.subr.bf16.mxu0 0
  %1308 = vmatpush1.bf16.msra.mxu0 0
  %1309 = vmatprep.subr.bf16.mxu0 0
  %1310 = vmatpush1.bf16.msra.mxu0 0
  %1311 = vmatprep.subr.bf16.mxu0 0
  %1312 = vmatpush1.bf16.msra.mxu0 0
  %1313 = vmatprep.subr.bf16.mxu0 0
  %1314 = vmatpush1.bf16.msra.mxu0 0
  %1315 = vmatprep.subr.bf16.mxu0 0
  %1316 = vmatpush1.bf16.msra.mxu0 0
  %1317 = vmatprep.subr.bf16.mxu0 0
  %1318 = vmatpush1.bf16.msra.mxu0 0
  %1319 = vmatprep.mubr.bf16.mxu0 0
  %1320 = vmatmul.mubr.bf16.gmra.mrb[0].mxu0 %v1267
  %v1321 = vpop.f32.mrb[0].mxu0
  %v1322 = vadd.f32 %v1178, %v1321
  %v1323 = vpop.f32.mrb[0].mxu0
  %v1324 = vadd.f32 %v1178, %v1323
  %v1325 = vpop.f32.mrb[0].mxu0
  %v1326 = vpop.f32.mrb[0].mxu0
  %1327 = vdwg.mxu0
  %1328 = vmatprep.subr.bf16.mxu0 %v1239
  %1329 = vmatpush1.bf16.msra.mxu0 %v1238
  %1330 = vmatprep.subr.bf16.mxu0 %v1245
  %1331 = vmatpush1.bf16.msra.mxu0 %v1244
  %1332 = vmatprep.subr.bf16.mxu0 %v1279
  %1333 = vmatpush1.bf16.msra.mxu0 %v1276
  %1334 = vmatprep.subr.bf16.mxu0 0
  %1335 = vmatpush1.bf16.msra.mxu0 0
  %1336 = vmatprep.subr.bf16.mxu0 0
  %1337 = vmatpush1.bf16.msra.mxu0 0
  %1338 = vmatprep.subr.bf16.mxu0 0
  %1339 = vmatpush1.bf16.msra.mxu0 0
  %1340 = vmatprep.subr.bf16.mxu0 0
  %1341 = vmatpush1.bf16.msra.mxu0 0
  %1342 = vmatprep.subr.bf16.mxu0 0
  %1343 = vmatpush1.bf16.msra.mxu0 0
  %1344 = vmatprep.subr.bf16.mxu0 0
  %1345 = vmatpush1.bf16.msra.mxu0 0
  %1346 = vmatprep.subr.bf16.mxu0 0
  %1347 = vmatpush1.bf16.msra.mxu0 0
  %1348 = vmatprep.subr.bf16.mxu0 0
  %1349 = vmatpush1.bf16.msra.mxu0 0
  %1350 = vmatprep.subr.bf16.mxu0 0
  %1351 = vmatpush1.bf16.msra.mxu0 0
  %1352 = vmatprep.subr.bf16.mxu0 0
  %1353 = vmatpush1.bf16.msra.mxu0 0
  %1354 = vmatprep.subr.bf16.mxu0 0
  %1355 = vmatpush1.bf16.msra.mxu0 0
  %1356 = vmatprep.subr.bf16.mxu0 0
  %1357 = vmatpush1.bf16.msra.mxu0 0
  %1358 = vmatprep.subr.bf16.mxu0 0
  %1359 = vmatpush1.bf16.msra.mxu0 0
  %1360 = vmatprep.mubr.bf16.mxu0 0
  %1361 = vmatmul.mubr.bf16.gmra.mrb[0].mxu0 %v1267
  %v1362 = vpop.f32.mrb[0].mxu0
  %v1363 = vadd.f32 %v1178, %v1362
  %v1364 = vpop.f32.mrb[0].mxu0
  %v1365 = vadd.f32 %v1178, %v1364
  %v1366 = vpop.f32.mrb[0].mxu0
  %v1367 = vpop.f32.mrb[0].mxu0
  %1368 = vdwg.mxu0
  %1369 = vmatprep.subr.bf16.mxu0 %v1241
  %1370 = vmatpush1.bf16.msra.mxu0 %v1240
  %1371 = vmatprep.subr.bf16.mxu0 %v1247
  %1372 = vmatpush1.bf16.msra.mxu0 %v1246
  %1373 = vmatprep.subr.bf16.mxu0 %v1285
  %1374 = vmatpush1.bf16.msra.mxu0 %v1282
  %1375 = vmatprep.subr.bf16.mxu0 0
  %1376 = vmatpush1.bf16.msra.mxu0 0
  %1377 = vmatprep.subr.bf16.mxu0 0
  %1378 = vmatpush1.bf16.msra.mxu0 0
  %1379 = vmatprep.subr.bf16.mxu0 0
  %1380 = vmatpush1.bf16.msra.mxu0 0
  %1381 = vmatprep.subr.bf16.mxu0 0
  %1382 = vmatpush1.bf16.msra.mxu0 0
  %1383 = vmatprep.subr.bf16.mxu0 0
  %1384 = vmatpush1.bf16.msra.mxu0 0
  %1385 = vmatprep.subr.bf16.mxu0 0
  %1386 = vmatpush1.bf16.msra.mxu0 0
  %1387 = vmatprep.subr.bf16.mxu0 0
  %1388 = vmatpush1.bf16.msra.mxu0 0
  %1389 = vmatprep.subr.bf16.mxu0 0
  %1390 = vmatpush1.bf16.msra.mxu0 0
  %1391 = vmatprep.subr.bf16.mxu0 0
  %1392 = vmatpush1.bf16.msra.mxu0 0
  %1393 = vmatprep.subr.bf16.mxu0 0
  %1394 = vmatpush1.bf16.msra.mxu0 0
  %1395 = vmatprep.subr.bf16.mxu0 0
  %1396 = vmatpush1.bf16.msra.mxu0 0
  %1397 = vmatprep.subr.bf16.mxu0 0
  %1398 = vmatpush1.bf16.msra.mxu0 0
  %1399 = vmatprep.subr.bf16.mxu0 0
  %1400 = vmatpush1.bf16.msra.mxu0 0
  %1401 = vmatprep.mubr.bf16.mxu0 0
  %1402 = vmatmul.mubr.bf16.gmra.mrb[0].mxu0 %v1267
  %v1403 = vpop.f32.mrb[0].mxu0
  %v1404 = vadd.f32 %v1178, %v1403
  %v1405 = vpop.f32.mrb[0].mxu0
  %v1406 = vadd.f32 %v1178, %v1405
  %v1407 = vpop.f32.mrb[0].mxu0
  %v1408 = vpop.f32.mrb[0].mxu0
  %1409 = vdwg.mxu0
  %v1410 = vunpack.c.l.bf16 %v24
  %v1411 = vunpack.c.h.bf16 %v24
  %v1412 = vunpack.c.l.bf16 %v25
  %v1416 = vcombine.high %v1410, %v1410
  %v1417 = vcombine.high %v1411, %v1411
  %v1418 = vcombine.high %v1412, %v1412
  %v1422 = vadd.f32 %v1322, %v1410
  %v1423 = vadd.f32 %v1324, %v1416
  %v1424 = vadd.f32 %v1363, %v1411
  %v1425 = vadd.f32 %v1365, %v1417
  %v1426 = vadd.f32 %v1404, %v1412
  %v1427 = vadd.f32 %v1406, %v1418
  %v1428 = vmax.f32 %v1422, 0.0
  %v1429 = vmax.f32 %v1423, 0.0
  %v1430 = vmax.f32 %v1424, 0.0
  %v1431 = vmax.f32 %v1425, 0.0
  %v1432 = vmax.f32 %v1426, 0.0
  %v1433 = vmax.f32 %v1427, 0.0
  %v1440 = vcombine.low %v1428, %v1429
  %v1441 = vcombine.low %v1430, %v1431
  %v1442 = vcombine.low %v1432, %v1433
  %1446 = vst [vmem:[%s6] sm:$0xff] %v1440
  %1447 = vst [vmem:[%s6 + $0x8] sm:$0xff] %v1441
  %1448 = vst [vmem:[%s6 + $0x10] sm:$0xff] %v1442
  // Predicated region
  $region26: #{basic_block_forward.1} parent=0 // pred_check
    _
  $region27: #{basic_block_forward.1} parent=0 // pred_check_branch
    %1450 = sbr.rel (0) target = $region29
  $region28: #{basic_block_forward.1} parent=0 // pred_region
    _
  $region29: #{basic_block_forward.1} parent=0 // pred_fallthru
    _
  // Predicated region
  $region30: #{basic_block_forward.1} parent=0 // pred_check
    _
  $region31: #{basic_block_forward.1} parent=0 // pred_check_branch
    %1452 = sbr.rel (0) target = $region33
  $region32: #{basic_block_forward.1} parent=0 // pred_region
    _
  $region33: #{basic_block_forward.1} parent=0 // pred_fallthru
    _

</llo_original>
